<compile_context>
chip_gen: v7x
topology: tpu7x:2x2x1
jax: 0.10.0
libtpu: 0.0.40
codegen_flags: <defaults>
</compile_context>

<pallas_src>
import functools

import jax
import jax.numpy as jnp
from jax.experimental import pallas as pl
from jax.experimental.pallas import tpu as pltpu


def _pick_tile(n, preferred, itemsize=4):
    """Largest tile <= preferred dividing n; prefer MXU/lane-friendly multiples
    of 256, then 128, then the sublane quantum (8 for f32, 16 for bf16);
    otherwise fall back to the full dim (always layout-legal)."""
    if n <= preferred:
        return n
    sub = 16 if itemsize < 4 else 8
    for align in (256, 128, sub):
        start = (preferred // align) * align
        for t in range(start, 0, -align):
            if n % t == 0:
                return t
    return n


def _default_vmem_limit():
    """Chip-aware scoped VMEM limit: ~75% of physical (48 MiB on v7x's 64 MiB,
    96 MiB on v5e/v6e's 128 MiB), conservative fallback if the query fails."""
    try:
        cap = pltpu.get_tpu_info().vmem_capacity_bytes
    except Exception:
        cap = 64 * 1024 * 1024
    return int(min(cap * 3 // 4, 112 * 1024 * 1024))


def _resident_spec(block_shape, index_map):
    """BlockSpec for a constant-index weight block: request single buffering
    (it is fetched exactly once, so double-buffering only wastes VMEM).
    Falls back to a default spec if this JAX version rejects pipeline_mode."""
    try:
        return pl.BlockSpec(block_shape, index_map,
                            pipeline_mode=pl.Buffered(buffer_count=1))
    except Exception:
        return pl.BlockSpec(block_shape, index_map)


# ---------------------------------------------------------------------------
# Kernel A: fused QKV projection
# ---------------------------------------------------------------------------
def _qkv_proj_kernel(x_ref, wqkv_ref, q_ref, k_ref, v_ref, *, heads, head_dim):
    x = x_ref[0]                                                     # (ts, C)
    # One MXU matmul against the concatenated (C, 3*inner) weight.
    qkv = jnp.dot(x, wqkv_ref[...],
                  preferred_element_type=jnp.float32)                # (ts, 3*inner)
    inner = heads * head_dim
    # Head scatter into head-major layout (static lane slices; `heads` is a
    # small static trip count).  Keeping this on-chip is cheaper than an extra
    # HBM round-trip for a wrapper-side transpose.
    # TODO(synk): for head_dim < 128 this layout pads every lane tile to 128;
    # packing 2 heads per 128-lane tile (block-diagonal score handling) would
    # halve Q/K/V traffic and double MXU fill of the score matmul.
    for h in range(heads):
        lo = h * head_dim
        q_ref[0, h] = qkv[:, lo:lo + head_dim].astype(q_ref.dtype)
        k_ref[0, h] = qkv[:, inner + lo:inner + lo + head_dim].astype(k_ref.dtype)
        v_ref[0, h] = qkv[:, 2 * inner + lo:2 * inner + lo + head_dim].astype(v_ref.dtype)


# ---------------------------------------------------------------------------
# Kernel B: flash attention (online softmax, head-chunked) + fused out-proj
# ---------------------------------------------------------------------------
def _flash_attn_kernel(q_ref, k_ref, v_ref, wo3_ref, bo_ref, o_ref,
                       m_sc, l_sc, acc_sc, oacc_sc, *, heads_per_block):
    hc = pl.program_id(2)          # head-chunk index   (arbitrary axis)
    kv = pl.program_id(3)          # kv-tile index      (innermost, arbitrary)

    @pl.when(kv == 0)
    def _():
        m_sc[...] = jnp.full(m_sc.shape, -jnp.inf, dtype=m_sc.dtype)
        l_sc[...] = jnp.zeros(l_sc.shape, dtype=l_sc.dtype)
        acc_sc[...] = jnp.zeros(acc_sc.shape, dtype=acc_sc.dtype)

    q = q_ref[0]                                                     # (hpc, tq, hd)
    k = k_ref[0]                                                     # (hpc, tk, hd)
    v = v_ref[0]                                                     # (hpc, tk, hd)

    # Softmax scale is already folded into Wq -> no VPU multiply on the
    # (hpc, tq, tk) score tensor in the hot loop.
    s = jnp.einsum('hqd,hkd->hqk', q, k,
                   preferred_element_type=jnp.float32)               # (hpc, tq, tk)

    m_prev = m_sc[...]                                               # (hpc, tq, 1)
    m_new = jnp.maximum(m_prev, s.max(axis=-1, keepdims=True))
    alpha = jnp.exp(m_prev - m_new)
    p = jnp.exp(s - m_new)                                           # f32 stats
    l_sc[...] = alpha * l_sc[...] + p.sum(axis=-1, keepdims=True)
    acc_sc[...] = alpha * acc_sc[...] + jnp.einsum(
        'hqk,hkd->hqd', p.astype(v.dtype), v,
        preferred_element_type=jnp.float32)                          # (hpc, tq, hd)
    m_sc[...] = m_new

    @pl.when(kv == pl.num_programs(3) - 1)
    def _():
        inv_l = pl.reciprocal(l_sc[...], approx=True)                # EUP rcp
        out_h = (acc_sc[...] * inv_l).astype(wo3_ref.dtype)          # (hpc, tq, hd)

        # to_out[0] fused: accumulate the projection head-by-head into a
        # (tq, C) f32 buffer -> live finalize state is (tq, C), never (H, tq, C).
        partial = jnp.dot(out_h[0], wo3_ref[hc * heads_per_block],
                          preferred_element_type=jnp.float32)        # (tq, C)
        for hh in range(1, heads_per_block):
            partial = partial + jnp.dot(
                out_h[hh], wo3_ref[hc * heads_per_block + hh],
                preferred_element_type=jnp.float32)

        @pl.when(hc == 0)
        def _():
            oacc_sc[...] = partial

        @pl.when(hc > 0)
        def _():
            oacc_sc[...] = oacc_sc[...] + partial

        @pl.when(hc == pl.num_programs(2) - 1)
        def _():
            o_ref[0] = (oacc_sc[...]
                        + bo_ref[0].astype(jnp.float32)).astype(o_ref.dtype)


# ---------------------------------------------------------------------------
# Wrapper: diffusers Attention.forward (default config)
# ---------------------------------------------------------------------------
def attention_forward(hidden_states, wq, wk, wv, wo, bo, *, heads, head_dim,
                      seq_tile=None, q_tile=None, kv_tile=None,
                      heads_per_block=None, compute_dtype=None,
                      vmem_limit_bytes=None):
    input_ndim = hidden_states.ndim
    if input_ndim == 4:                       # (B, C, H, W) -> (B, H*W, C) glue
        Bn, Cn, Hn, Wn = hidden_states.shape
        x = hidden_states.reshape(Bn, Cn, Hn * Wn).transpose(0, 2, 1)
    else:
        x = hidden_states

    B, S, C = x.shape
    inner = heads * head_dim
    scale = float(head_dim) ** -0.5
    out_dtype = x.dtype
    cdt = jnp.dtype(compute_dtype) if compute_dtype is not None else jnp.dtype(out_dtype)
    itemsize = cdt.itemsize

    ts = seq_tile if seq_tile is not None else _pick_tile(S, 512, itemsize)
    tq = q_tile if q_tile is not None else _pick_tile(S, 256, itemsize)
    tkv = kv_tile if kv_tile is not None else _pick_tile(S, 256, itemsize)
    assert S % ts == 0 and S % tq == 0 and S % tkv == 0

    if heads_per_block is None:   # small head chunks cut live f32 score tensors
        heads_per_block = max(d for d in range(1, min(heads, 4) + 1) if heads % d == 0)
    hpc = heads_per_block
    assert heads % hpc == 0
    n_hc = heads // hpc

    if vmem_limit_bytes is None:
        vmem_limit_bytes = _default_vmem_limit()

    # One-time weight packing (plain JAX, outside the kernels).  The softmax
    # scale is folded into Wq here (zero-cost), matmul operands are cast to the
    # compute dtype (pass bfloat16 for full MXU rate on v6e/v7x).
    wqkv = jnp.concatenate([wq * scale, wk, wv], axis=1).astype(cdt)   # (C, 3*inner)
    wo3 = wo.reshape(heads, head_dim, C).astype(cdt)                   # (H, hd, C)
    bo_c = bo.astype(cdt)                                              # (1, C)
    x_c = x.astype(cdt)

    # ---- Kernel A: fused QKV projection -----------------------------------
    qkv_struct = jax.ShapeDtypeStruct((B, heads, S, head_dim), cdt)
    q, k, v = pl.pallas_call(
        functools.partial(_qkv_proj_kernel, heads=heads, head_dim=head_dim),
        out_shape=(qkv_struct, qkv_struct, qkv_struct),
        grid_spec=pltpu.PrefetchScalarGridSpec(
            num_scalar_prefetch=0,
            grid=(B, S // ts),
            in_specs=[
                pl.BlockSpec((1, ts, C), lambda b, i: (b, i, 0)),
                _resident_spec((C, 3 * inner), lambda b, i: (0, 0)),
            ],
            out_specs=[
                pl.BlockSpec((1, heads, ts, head_dim), lambda b, i: (b, 0, i, 0)),
                pl.BlockSpec((1, heads, ts, head_dim), lambda b, i: (b, 0, i, 0)),
                pl.BlockSpec((1, heads, ts, head_dim), lambda b, i: (b, 0, i, 0)),
            ],
        ),
        compiler_params=pltpu.CompilerParams(
            dimension_semantics=("parallel", "parallel"),
            vmem_limit_bytes=vmem_limit_bytes),
        cost_estimate=pl.CostEstimate(
            flops=int(2 * B * S * C * 3 * inner),
            transcendentals=0,
            bytes_accessed=int((B * S * C + C * 3 * inner
                                + 3 * B * S * inner) * itemsize)),
    )(x_c, wqkv)

    # ---- Kernel B: flash attention + fused output projection --------------
    n_q = S // tq
    out3 = pl.pallas_call(
        functools.partial(_flash_attn_kernel, heads_per_block=hpc),
        out_shape=jax.ShapeDtypeStruct((B, S, C), out_dtype),
        grid_spec=pltpu.PrefetchScalarGridSpec(
            num_scalar_prefetch=0,
            grid=(B, n_q, n_hc, S // tkv),
            in_specs=[
                pl.BlockSpec((1, hpc, tq, head_dim),
                             lambda b, i, h, j: (b, h, i, 0)),
                pl.BlockSpec((1, hpc, tkv, head_dim),
                             lambda b, i, h, j: (b, h, j, 0)),
                pl.BlockSpec((1, hpc, tkv, head_dim),
                             lambda b, i, h, j: (b, h, j, 0)),
                # Constant-index weight blocks -> fetched once, single-buffered.
                _resident_spec((heads, head_dim, C), lambda b, i, h, j: (0, 0, 0)),
                _resident_spec((1, C), lambda b, i, h, j: (0, 0)),
            ],
            out_specs=pl.BlockSpec((1, tq, C), lambda b, i, h, j: (b, i, 0)),
            scratch_shapes=[
                pltpu.VMEM((hpc, tq, 1), jnp.float32),          # running max m
                pltpu.VMEM((hpc, tq, 1), jnp.float32),          # running sum l
                pltpu.VMEM((hpc, tq, head_dim), jnp.float32),   # running acc
                pltpu.VMEM((tq, C), jnp.float32),               # out-proj accumulator
            ],
        ),
        compiler_params=pltpu.CompilerParams(
            dimension_semantics=("parallel", "parallel", "arbitrary", "arbitrary"),
            vmem_limit_bytes=vmem_limit_bytes),
        cost_estimate=pl.CostEstimate(
            flops=int(4 * B * heads * S * S * head_dim + 2 * B * S * inner * C),
            transcendentals=int(B * heads * S * S),
            bytes_accessed=int((B * S * inner + 2 * B * S * inner * n_q
                                + inner * C + C + B * S * C) * itemsize)),
        # TODO(synk): on v7x, fp8 K/V (per-tile scales) for the score / P.V
        # matmuls would roughly double MXU rate and halve K/V traffic.
    )(q, k, v, wo3, bo_c)

    # to_out[1] (Dropout) is a no-op at eval; residual_connection=False and
    # rescale_output_factor=1.0 in the default config.
    if input_ndim == 4:
        return out3.transpose(0, 2, 1).reshape(Bn, Cn, Hn, Wn)
    return out3


def attention_reference(hidden_states, wq, wk, wv, wo, bo, *, heads, head_dim):
    """Pure-JAX mirror of AttnProcessor2_0 (defaults) for verification."""
    input_ndim = hidden_states.ndim
    if input_ndim == 4:
        Bn, Cn, Hn, Wn = hidden_states.shape
        x = hidden_states.reshape(Bn, Cn, Hn * Wn).transpose(0, 2, 1)
    else:
        x = hidden_states
    B, S, C = x.shape
    scale = float(head_dim) ** -0.5
    q = (x @ wq).reshape(B, S, heads, head_dim).transpose(0, 2, 1, 3)
    k = (x @ wk).reshape(B, S, heads, head_dim).transpose(0, 2, 1, 3)
    v = (x @ wv).reshape(B, S, heads, head_dim).transpose(0, 2, 1, 3)
    s = jnp.einsum('bhqd,bhkd->bhqk', q, k) * scale
    p = jax.nn.softmax(s, axis=-1)
    o = jnp.einsum('bhqk,bhkd->bhqd', p, v)
    o = o.transpose(0, 2, 1, 3).reshape(B, S, heads * head_dim)
    o = o @ wo + bo[0]
    if input_ndim == 4:
        o = o.transpose(0, 2, 1).reshape(Bn, Cn, Hn, Wn)
    return o


if __name__ == "__main__":
    # Attention(query_dim=32, heads=4, dim_head=8), self-attention, NCHW input.
    B, CH, HH, WW = 2, 32, 4, 4          # sequence length S = 16
    HEADS, HEAD_DIM = 4, 8
    INNER = HEADS * HEAD_DIM             # 32
    OUT_DIM = CH                         # out_dim defaults to query_dim

    key = jax.random.PRNGKey(0)
    kx, kwq, kwk, kwv, kwo, kwb = jax.random.split(key, 6)
    x = jax.random.normal(kx, (B, CH, HH, WW), dtype=jnp.float32)
    # torch Linear weights transposed to (in, out).
    wq = jax.random.normal(kwq, (CH, INNER), dtype=jnp.float32) * 0.05
    wk = jax.random.normal(kwk, (CH, INNER), dtype=jnp.float32) * 0.05
    wv = jax.random.normal(kwv, (CH, INNER), dtype=jnp.float32) * 0.05
    wo = jax.random.normal(kwo, (INNER, OUT_DIM), dtype=jnp.float32) * 0.05
    bo = jax.random.normal(kwb, (1, OUT_DIM), dtype=jnp.float32) * 0.05

    ref = attention_reference(x, wq, wk, wv, wo, bo, heads=HEADS, head_dim=HEAD_DIM)

    # f32 path with small tiles + 2 head chunks so the demo exercises the full
    # multi-KV-tile / multi-head-chunk flash pipeline (grid = (2, 2, 2, 2)).
    out = attention_forward(x, wq, wk, wv, wo, bo, heads=HEADS, head_dim=HEAD_DIM,
                            seq_tile=8, q_tile=8, kv_tile=8, heads_per_block=2)
    out = jax.block_until_ready(out)
    assert out.shape == (B, CH, HH, WW)
    # approx reciprocal (EUP) in the softmax finalize -> slightly looser tol.
    assert jnp.allclose(out, ref, atol=2e-3, rtol=2e-3), "f32 mismatch vs reference"

    # bf16 compute path (production configuration: full-rate MXU), full-S tiles
    # so bf16 sublane packing (16) is respected at this tiny sequence length.
    out_bf16 = attention_forward(x, wq, wk, wv, wo, bo, heads=HEADS,
                                 head_dim=HEAD_DIM, heads_per_block=2,
                                 compute_dtype=jnp.bfloat16)
    out_bf16 = jax.block_until_ready(out_bf16)
    assert jnp.allclose(out_bf16, ref, atol=5e-2, rtol=5e-2), "bf16 mismatch vs reference"

    # TODO(synk): spatial_norm / group_norm / cross-attention
    # (encoder_hidden_states), attention_mask and norm_cross branches are
    # disabled in the default Attention config and are not implemented here.
    print("KERNEL_OK")
</pallas_src>

<mosaic_0001>
module attributes {stable_mosaic.version = 11 : i64} {
  func.func @_qkv_proj_kernel(%arg0: i32, %arg1: i32, %arg2: memref<1x8x32xf32, #tpu.memory_space<vmem>>, %arg3: memref<32x96xf32, #tpu.memory_space<vmem>>, %arg4: memref<1x4x8x8xf32, #tpu.memory_space<vmem>>, %arg5: memref<1x4x8x8xf32, #tpu.memory_space<vmem>>, %arg6: memref<1x4x8x8xf32, #tpu.memory_space<vmem>>) attributes {dimension_semantics = [#tpu.dimension_semantics<parallel>, #tpu.dimension_semantics<parallel>], iteration_bounds = array<i64: 2, 2>, scalar_prefetch = 0 : i64, scratch_operands = 0 : i64, tpu.core_type = #tpu.core_type<tc>, window_params = [{transform_indices = @transform_0, window_bounds = array<i64: 1, 8, 32>}, {pipeline_mode = #tpu.pipeline_mode<synchronous>, transform_indices = @transform_1, window_bounds = array<i64: 32, 96>}, {transform_indices = @transform_2, window_bounds = array<i64: 1, 4, 8, 8>}, {transform_indices = @transform_3, window_bounds = array<i64: 1, 4, 8, 8>}, {transform_indices = @transform_4, window_bounds = array<i64: 1, 4, 8, 8>}]} {
    %c0 = arith.constant 0 : index
    %c0_0 = arith.constant 0 : index
    %c0_1 = arith.constant 0 : index
    %0 = vector.load %arg2[%c0, %c0_0, %c0_1] : memref<1x8x32xf32, #tpu.memory_space<vmem>>, vector<1x8x32xf32>
    %1 = vector.shape_cast %0 : vector<1x8x32xf32> to vector<8x32xf32>
    %c0_2 = arith.constant 0 : index
    %c0_3 = arith.constant 0 : index
    %2 = vector.load %arg3[%c0_2, %c0_3] : memref<32x96xf32, #tpu.memory_space<vmem>>, vector<32x96xf32>
    %cst = arith.constant dense<0.000000e+00> : vector<8x96xf32>
    %3 = tpu.matmul %1, %2, %cst {dimension_numbers = #tpu.dot_dimension_numbers<[1], [0], [0], [1], [0, 0, 1, 1], [], []>} : vector<8x32xf32>, vector<32x96xf32>, vector<8x96xf32> -> vector<8x96xf32>
    %4 = vector.extract_strided_slice %3 {offsets = [0, 0], sizes = [8, 8], strides = [1, 1]} : vector<8x96xf32> to vector<8x8xf32>
    %c0_4 = arith.constant 0 : index
    %c0_5 = arith.constant 0 : index
    %c0_6 = arith.constant 0 : index
    %c0_7 = arith.constant 0 : index
    %5 = vector.load %arg4[%c0_4, %c0_5, %c0_6, %c0_7] : memref<1x4x8x8xf32, #tpu.memory_space<vmem>>, vector<1x1x8x8xf32>
    %6 = vector.shape_cast %5 : vector<1x1x8x8xf32> to vector<8x8xf32>
    %7 = vector.shape_cast %4 : vector<8x8xf32> to vector<1x1x8x8xf32>
    tpu.vector_store %arg4[%c0_4, %c0_5, %c0_6, %c0_7], %7 {strides = array<i32>} : memref<1x4x8x8xf32, #tpu.memory_space<vmem>>, vector<1x1x8x8xf32>,
    %8 = vector.extract_strided_slice %3 {offsets = [0, 32], sizes = [8, 8], strides = [1, 1]} : vector<8x96xf32> to vector<8x8xf32>
    %c0_8 = arith.constant 0 : index
    %c0_9 = arith.constant 0 : index
    %c0_10 = arith.constant 0 : index
    %c0_11 = arith.constant 0 : index
    %9 = vector.load %arg5[%c0_8, %c0_9, %c0_10, %c0_11] : memref<1x4x8x8xf32, #tpu.memory_space<vmem>>, vector<1x1x8x8xf32>
    %10 = vector.shape_cast %9 : vector<1x1x8x8xf32> to vector<8x8xf32>
    %11 = vector.shape_cast %8 : vector<8x8xf32> to vector<1x1x8x8xf32>
    tpu.vector_store %arg5[%c0_8, %c0_9, %c0_10, %c0_11], %11 {strides = array<i32>} : memref<1x4x8x8xf32, #tpu.memory_space<vmem>>, vector<1x1x8x8xf32>,
    %12 = vector.extract_strided_slice %3 {offsets = [0, 64], sizes = [8, 8], strides = [1, 1]} : vector<8x96xf32> to vector<8x8xf32>
    %c0_12 = arith.constant 0 : index
    %c0_13 = arith.constant 0 : index
    %c0_14 = arith.constant 0 : index
    %c0_15 = arith.constant 0 : index
    %13 = vector.load %arg6[%c0_12, %c0_13, %c0_14, %c0_15] : memref<1x4x8x8xf32, #tpu.memory_space<vmem>>, vector<1x1x8x8xf32>
    %14 = vector.shape_cast %13 : vector<1x1x8x8xf32> to vector<8x8xf32>
    %15 = vector.shape_cast %12 : vector<8x8xf32> to vector<1x1x8x8xf32>
    tpu.vector_store %arg6[%c0_12, %c0_13, %c0_14, %c0_15], %15 {strides = array<i32>} : memref<1x4x8x8xf32, #tpu.memory_space<vmem>>, vector<1x1x8x8xf32>,
    %16 = vector.extract_strided_slice %3 {offsets = [0, 8], sizes = [8, 8], strides = [1, 1]} : vector<8x96xf32> to vector<8x8xf32>
    %c0_16 = arith.constant 0 : index
    %c1 = arith.constant 1 : index
    %c0_17 = arith.constant 0 : index
    %c0_18 = arith.constant 0 : index
    %17 = vector.load %arg4[%c0_16, %c1, %c0_17, %c0_18] : memref<1x4x8x8xf32, #tpu.memory_space<vmem>>, vector<1x1x8x8xf32>
    %18 = vector.shape_cast %17 : vector<1x1x8x8xf32> to vector<8x8xf32>
    %19 = vector.shape_cast %16 : vector<8x8xf32> to vector<1x1x8x8xf32>
    tpu.vector_store %arg4[%c0_16, %c1, %c0_17, %c0_18], %19 {strides = array<i32>} : memref<1x4x8x8xf32, #tpu.memory_space<vmem>>, vector<1x1x8x8xf32>,
    %20 = vector.extract_strided_slice %3 {offsets = [0, 40], sizes = [8, 8], strides = [1, 1]} : vector<8x96xf32> to vector<8x8xf32>
    %c0_19 = arith.constant 0 : index
    %c1_20 = arith.constant 1 : index
    %c0_21 = arith.constant 0 : index
    %c0_22 = arith.constant 0 : index
    %21 = vector.load %arg5[%c0_19, %c1_20, %c0_21, %c0_22] : memref<1x4x8x8xf32, #tpu.memory_space<vmem>>, vector<1x1x8x8xf32>
    %22 = vector.shape_cast %21 : vector<1x1x8x8xf32> to vector<8x8xf32>
    %23 = vector.shape_cast %20 : vector<8x8xf32> to vector<1x1x8x8xf32>
    tpu.vector_store %arg5[%c0_19, %c1_20, %c0_21, %c0_22], %23 {strides = array<i32>} : memref<1x4x8x8xf32, #tpu.memory_space<vmem>>, vector<1x1x8x8xf32>,
    %24 = vector.extract_strided_slice %3 {offsets = [0, 72], sizes = [8, 8], strides = [1, 1]} : vector<8x96xf32> to vector<8x8xf32>
    %c0_23 = arith.constant 0 : index
    %c1_24 = arith.constant 1 : index
    %c0_25 = arith.constant 0 : index
    %c0_26 = arith.constant 0 : index
    %25 = vector.load %arg6[%c0_23, %c1_24, %c0_25, %c0_26] : memref<1x4x8x8xf32, #tpu.memory_space<vmem>>, vector<1x1x8x8xf32>
    %26 = vector.shape_cast %25 : vector<1x1x8x8xf32> to vector<8x8xf32>
    %27 = vector.shape_cast %24 : vector<8x8xf32> to vector<1x1x8x8xf32>
    tpu.vector_store %arg6[%c0_23, %c1_24, %c0_25, %c0_26], %27 {strides = array<i32>} : memref<1x4x8x8xf32, #tpu.memory_space<vmem>>, vector<1x1x8x8xf32>,
    %28 = vector.extract_strided_slice %3 {offsets = [0, 16], sizes = [8, 8], strides = [1, 1]} : vector<8x96xf32> to vector<8x8xf32>
    %c0_27 = arith.constant 0 : index
    %c2 = arith.constant 2 : index
    %c0_28 = arith.constant 0 : index
    %c0_29 = arith.constant 0 : index
    %29 = vector.load %arg4[%c0_27, %c2, %c0_28, %c0_29] : memref<1x4x8x8xf32, #tpu.memory_space<vmem>>, vector<1x1x8x8xf32>
    %30 = vector.shape_cast %29 : vector<1x1x8x8xf32> to vector<8x8xf32>
    %31 = vector.shape_cast %28 : vector<8x8xf32> to vector<1x1x8x8xf32>
    tpu.vector_store %arg4[%c0_27, %c2, %c0_28, %c0_29], %31 {strides = array<i32>} : memref<1x4x8x8xf32, #tpu.memory_space<vmem>>, vector<1x1x8x8xf32>,
    %32 = vector.extract_strided_slice %3 {offsets = [0, 48], sizes = [8, 8], strides = [1, 1]} : vector<8x96xf32> to vector<8x8xf32>
    %c0_30 = arith.constant 0 : index
    %c2_31 = arith.constant 2 : index
    %c0_32 = arith.constant 0 : index
    %c0_33 = arith.constant 0 : index
    %33 = vector.load %arg5[%c0_30, %c2_31, %c0_32, %c0_33] : memref<1x4x8x8xf32, #tpu.memory_space<vmem>>, vector<1x1x8x8xf32>
    %34 = vector.shape_cast %33 : vector<1x1x8x8xf32> to vector<8x8xf32>
    %35 = vector.shape_cast %32 : vector<8x8xf32> to vector<1x1x8x8xf32>
    tpu.vector_store %arg5[%c0_30, %c2_31, %c0_32, %c0_33], %35 {strides = array<i32>} : memref<1x4x8x8xf32, #tpu.memory_space<vmem>>, vector<1x1x8x8xf32>,
    %36 = vector.extract_strided_slice %3 {offsets = [0, 80], sizes = [8, 8], strides = [1, 1]} : vector<8x96xf32> to vector<8x8xf32>
    %c0_34 = arith.constant 0 : index
    %c2_35 = arith.constant 2 : index
    %c0_36 = arith.constant 0 : index
    %c0_37 = arith.constant 0 : index
    %37 = vector.load %arg6[%c0_34, %c2_35, %c0_36, %c0_37] : memref<1x4x8x8xf32, #tpu.memory_space<vmem>>, vector<1x1x8x8xf32>
    %38 = vector.shape_cast %37 : vector<1x1x8x8xf32> to vector<8x8xf32>
    %39 = vector.shape_cast %36 : vector<8x8xf32> to vector<1x1x8x8xf32>
    tpu.vector_store %arg6[%c0_34, %c2_35, %c0_36, %c0_37], %39 {strides = array<i32>} : memref<1x4x8x8xf32, #tpu.memory_space<vmem>>, vector<1x1x8x8xf32>,
    %40 = vector.extract_strided_slice %3 {offsets = [0, 24], sizes = [8, 8], strides = [1, 1]} : vector<8x96xf32> to vector<8x8xf32>
    %c0_38 = arith.constant 0 : index
    %c3 = arith.constant 3 : index
    %c0_39 = arith.constant 0 : index
    %c0_40 = arith.constant 0 : index
    %41 = vector.load %arg4[%c0_38, %c3, %c0_39, %c0_40] : memref<1x4x8x8xf32, #tpu.memory_space<vmem>>, vector<1x1x8x8xf32>
    %42 = vector.shape_cast %41 : vector<1x1x8x8xf32> to vector<8x8xf32>
    %43 = vector.shape_cast %40 : vector<8x8xf32> to vector<1x1x8x8xf32>
    tpu.vector_store %arg4[%c0_38, %c3, %c0_39, %c0_40], %43 {strides = array<i32>} : memref<1x4x8x8xf32, #tpu.memory_space<vmem>>, vector<1x1x8x8xf32>,
    %44 = vector.extract_strided_slice %3 {offsets = [0, 56], sizes = [8, 8], strides = [1, 1]} : vector<8x96xf32> to vector<8x8xf32>
    %c0_41 = arith.constant 0 : index
    %c3_42 = arith.constant 3 : index
    %c0_43 = arith.constant 0 : index
    %c0_44 = arith.constant 0 : index
    %45 = vector.load %arg5[%c0_41, %c3_42, %c0_43, %c0_44] : memref<1x4x8x8xf32, #tpu.memory_space<vmem>>, vector<1x1x8x8xf32>
    %46 = vector.shape_cast %45 : vector<1x1x8x8xf32> to vector<8x8xf32>
    %47 = vector.shape_cast %44 : vector<8x8xf32> to vector<1x1x8x8xf32>
    tpu.vector_store %arg5[%c0_41, %c3_42, %c0_43, %c0_44], %47 {strides = array<i32>} : memref<1x4x8x8xf32, #tpu.memory_space<vmem>>, vector<1x1x8x8xf32>,
    %48 = vector.extract_strided_slice %3 {offsets = [0, 88], sizes = [8, 8], strides = [1, 1]} : vector<8x96xf32> to vector<8x8xf32>
    %c0_45 = arith.constant 0 : index
    %c3_46 = arith.constant 3 : index
    %c0_47 = arith.constant 0 : index
    %c0_48 = arith.constant 0 : index
    %49 = vector.load %arg6[%c0_45, %c3_46, %c0_47, %c0_48] : memref<1x4x8x8xf32, #tpu.memory_space<vmem>>, vector<1x1x8x8xf32>
    %50 = vector.shape_cast %49 : vector<1x1x8x8xf32> to vector<8x8xf32>
    %51 = vector.shape_cast %48 : vector<8x8xf32> to vector<1x1x8x8xf32>
    tpu.vector_store %arg6[%c0_45, %c3_46, %c0_47, %c0_48], %51 {strides = array<i32>} : memref<1x4x8x8xf32, #tpu.memory_space<vmem>>, vector<1x1x8x8xf32>,
    return
  }
  func.func @transform_0(%arg0: i32, %arg1: i32) -> (i32, i32, i32) {
    %c0_i32 = arith.constant 0 : i32
    %c0_i32_0 = arith.constant 0 : i32
    return %arg0, %arg1, %c0_i32 : i32, i32, i32
  }
  func.func @transform_1(%arg0: i32, %arg1: i32) -> (i32, i32) {
    %c0_i32 = arith.constant 0 : i32
    %c0_i32_0 = arith.constant 0 : i32
    %c0_i32_1 = arith.constant 0 : i32
    return %c0_i32, %c0_i32_0 : i32, i32
  }
  func.func @transform_2(%arg0: i32, %arg1: i32) -> (i32, i32, i32, i32) {
    %c0_i32 = arith.constant 0 : i32
    %c0_i32_0 = arith.constant 0 : i32
    %c0_i32_1 = arith.constant 0 : i32
    return %arg0, %c0_i32, %arg1, %c0_i32_0 : i32, i32, i32, i32
  }
  func.func @transform_3(%arg0: i32, %arg1: i32) -> (i32, i32, i32, i32) {
    %c0_i32 = arith.constant 0 : i32
    %c0_i32_0 = arith.constant 0 : i32
    %c0_i32_1 = arith.constant 0 : i32
    return %arg0, %c0_i32, %arg1, %c0_i32_0 : i32, i32, i32, i32
  }
  func.func @transform_4(%arg0: i32, %arg1: i32) -> (i32, i32, i32, i32) {
    %c0_i32 = arith.constant 0 : i32
    %c0_i32_0 = arith.constant 0 : i32
    %c0_i32_1 = arith.constant 0 : i32
    return %arg0, %c0_i32, %arg1, %c0_i32_0 : i32, i32, i32, i32
  }
}

</mosaic_0001>

<llo_original>
// kernel: tpu_custom_call.1
$region0: #{tpu_custom_call.1}
  #allocation0 [shape = 'u32[]', space=smem, size = 0x4, offset = 0x4, fixed_abs, tag = 'smem constant byte address 0x4 - core index']
  #allocation1 [shape = 'u32[144,128]{1,0:T(1,128)}', space=vmem, size = 0x12000, scoped, tag = 'internal scratch']
  %s0 = inlined_call_operand.hbm [shape: f32[2,16,32], index: 0, kind: input, shape index: {}]
  %s1 = inlined_call_operand.hbm [shape: f32[32,96], index: 1, kind: input, shape index: {}]
  %s2 = inlined_call_operand.vmem [shape: f32[2,4,16,8], index: 2, kind: output, shape index: {0}]
  %s3 = inlined_call_operand.vmem [shape: f32[2,4,16,8], index: 3, kind: output, shape index: {1}]
  %s4 = inlined_call_operand.vmem [shape: f32[2,4,16,8], index: 4, kind: output, shape index: {2}]
  %5 = xla_tuple %s2, %s3, %s4
  %s6 = sld [smem:[#allocation0]]
  $region167: #{tpu_custom_call.1} parent=0
    _
  %s8 = ssub.s32 1, %s6
  %s9 = scalar_select 0, %s8, %s6
  $region1: #{tpu_custom_call.1} parent=0
    #allocation2 [shape = 'u8[8192]{0}', space=vmem, size = 0x2000, scoped, tag = 'input window, operand 0']
    #allocation3 [shape = 's32[2]{0}', space=sflag, size = 0x8, scoped, tag = 'scoped memory for tpu_custom_call.1']
    #allocation4 [shape = 'u8[16384]{0}', space=vmem, size = 0x4000, scoped, tag = 'input window, operand 1, single buffered']
    #allocation5 [shape = 's32[1]{0}', space=sflag, size = 0x4, scoped, tag = 'scoped memory for tpu_custom_call.1']
    #allocation6 [shape = 'u8[32768]{0}', space=vmem, size = 0x8000, scoped, tag = 'output window, operand 0']
    #allocation7 [shape = 'u8[32768]{0}', space=vmem, size = 0x8000, scoped, tag = 'output window, operand 1']
    #allocation8 [shape = 'u8[32768]{0}', space=vmem, size = 0x8000, scoped, tag = 'output window, operand 2']
    %10 = vsyncpa [#allocation3], 0
    %s11 = scalar_lea.sflag [#allocation3], 1
    %12 = vsyncpa %s11, 0
    %13 = vsyncpa [#allocation5], 0
    loop: start=0, step=1, limit=6
    $region2: #{tpu_custom_call.1} parent=1 // loop_pre_header
      _
    $region3: #{tpu_custom_call.1} parent=1 // loop_header
      %s15 = sphi 0, %s19
      %p16 = scmp.ge.s32.totalorder %s15, 6
      %s22 = sphi 0, %s34
      %s23 = sphi 0, %s30
      %s24 = sphi 0, %s22
      %s25 = sphi 0, %s23
      %s26 = sphi 0, %s24
      %s27 = sphi 0, %s25
      %s39 = sphi 0, %s41
      %s42 = sphi 0, %s39
      %s43 = sphi 0, %s42
      %s59 = sphi 0, %s43
      %s63 = sphi 0, %s63
      %s65 = sphi 0, %s63
      %s66 = sphi 0, %s65
      %s80 = sphi 0, %s66
      %s88 = sphi 0, %s90
      %s91 = sphi 0, %s88
      %s92 = sphi 0, %s91
      %s108 = sphi 0, %s92
      %s116 = sphi 0, %s118
      %s119 = sphi 0, %s116
      %s120 = sphi 0, %s119
      %s136 = sphi 0, %s120
      %s144 = sphi 0, %s146
      %s147 = sphi 0, %s144
      %s148 = sphi 0, %s147
      %s164 = sphi 0, %s148
    $region4: #{tpu_custom_call.1} parent=1 // loop_header_branch
      %18 = sbr.rel (%p16) target = $region8
    $region5: #{tpu_custom_call.1} parent=1 // loop_body
      %s20 = ssub.s32 %s15, 1
      %s21 = ssub.s32 %s15, 2
      %s28 = sadd.s32 1, %s23
      %p29 = scmp.ge.s32.totalorder %s28, 2
      %s30 = scalar_select %p29, 0, %s28
      %s31 = sadd.s32 1, %s22
      %s32 = scalar_select %p29, %s31, %s22
      %p33 = scmp.ge.s32.totalorder %s32, 2
      %s34 = scalar_select %p33, 0, %s32
      %s35 = ssub.s32 %s22, %s34
      %s36 = ssub.s32 %s23, %s30
      %s37 = sor.u32 %s35, %s36
      %p38 = scmp.eq.s32.totalorder %s37, 0
      %s40 = sadd.s32 %s39, 1
      %s41 = scalar_select %p38, %s39, %s40
      %p44 = pneg %p38
      %p45 = scmp.eq.s32.totalorder %s15, 3
      %p46 = por %p44, %p45
      %p47 = scmp.ne.s32.totalorder %s39, %s42
      %p48 = scmp.eq.s32.totalorder %s15, 0
      %p49 = por %p47, %p48
      %p50 = scmp.ne.s32.totalorder %s39, %s42
      %p51 = scmp.eq.s32.totalorder %s20, 3
      %p52 = por %p50, %p51
      %p53 = scmp.ne.s32.totalorder %s42, %s43
      %p54 = scmp.eq.s32.totalorder %s20, 0
      %p55 = por %p53, %p54
      %p56 = scmp.ne.s32.totalorder %s42, %s43
      %p57 = scmp.eq.s32.totalorder %s21, 3
      %p58 = por %p56, %p57
      %p60 = scmp.ne.s32.totalorder %s43, %s59
      %p61 = scmp.eq.s32.totalorder %s21, 0
      %p62 = por %p60, %p61
      %s64 = sadd.s32 %s63, 1
      %p67 = scmp.eq.s32.totalorder %s15, 3
      %p68 = scmp.ne.s32.totalorder %s63, %s65
      %p69 = scmp.eq.s32.totalorder %s15, 0
      %p70 = por %p68, %p69
      %p71 = scmp.ne.s32.totalorder %s63, %s65
      %p72 = scmp.eq.s32.totalorder %s20, 3
      %p73 = por %p71, %p72
      %p74 = scmp.ne.s32.totalorder %s65, %s66
      %p75 = scmp.eq.s32.totalorder %s20, 0
      %p76 = por %p74, %p75
      %p77 = scmp.ne.s32.totalorder %s65, %s66
      %p78 = scmp.eq.s32.totalorder %s21, 3
      %p79 = por %p77, %p78
      %p81 = scmp.ne.s32.totalorder %s66, %s80
      %p82 = scmp.eq.s32.totalorder %s21, 0
      %p83 = por %p81, %p82
      %s84 = ssub.s32 %s22, %s34
      %s85 = ssub.s32 %s23, %s30
      %s86 = sor.u32 %s84, %s85
      %p87 = scmp.eq.s32.totalorder %s86, 0
      %s89 = sadd.s32 %s88, 1
      %s90 = scalar_select %p87, %s88, %s89
      %p93 = pneg %p87
      %p94 = scmp.eq.s32.totalorder %s15, 3
      %p95 = por %p93, %p94
      %p96 = scmp.ne.s32.totalorder %s88, %s91
      %p97 = scmp.eq.s32.totalorder %s15, 0
      %p98 = por %p96, %p97
      %p99 = scmp.ne.s32.totalorder %s88, %s91
      %p100 = scmp.eq.s32.totalorder %s20, 3
      %p101 = por %p99, %p100
      %p102 = scmp.ne.s32.totalorder %s91, %s92
      %p103 = scmp.eq.s32.totalorder %s20, 0
      %p104 = por %p102, %p103
      %p105 = scmp.ne.s32.totalorder %s91, %s92
      %p106 = scmp.eq.s32.totalorder %s21, 3
      %p107 = por %p105, %p106
      %p109 = scmp.ne.s32.totalorder %s92, %s108
      %p110 = scmp.eq.s32.totalorder %s21, 0
      %p111 = por %p109, %p110
      %s112 = ssub.s32 %s22, %s34
      %s113 = ssub.s32 %s23, %s30
      %s114 = sor.u32 %s112, %s113
      %p115 = scmp.eq.s32.totalorder %s114, 0
      %s117 = sadd.s32 %s116, 1
      %s118 = scalar_select %p115, %s116, %s117
      %p121 = pneg %p115
      %p122 = scmp.eq.s32.totalorder %s15, 3
      %p123 = por %p121, %p122
      %p124 = scmp.ne.s32.totalorder %s116, %s119
      %p125 = scmp.eq.s32.totalorder %s15, 0
      %p126 = por %p124, %p125
      %p127 = scmp.ne.s32.totalorder %s116, %s119
      %p128 = scmp.eq.s32.totalorder %s20, 3
      %p129 = por %p127, %p128
      %p130 = scmp.ne.s32.totalorder %s119, %s120
      %p131 = scmp.eq.s32.totalorder %s20, 0
      %p132 = por %p130, %p131
      %p133 = scmp.ne.s32.totalorder %s119, %s120
      %p134 = scmp.eq.s32.totalorder %s21, 3
      %p135 = por %p133, %p134
      %p137 = scmp.ne.s32.totalorder %s120, %s136
      %p138 = scmp.eq.s32.totalorder %s21, 0
      %p139 = por %p137, %p138
      %s140 = ssub.s32 %s22, %s34
      %s141 = ssub.s32 %s23, %s30
      %s142 = sor.u32 %s140, %s141
      %p143 = scmp.eq.s32.totalorder %s142, 0
      %s145 = sadd.s32 %s144, 1
      %s146 = scalar_select %p143, %s144, %s145
      %p149 = pneg %p143
      %p150 = scmp.eq.s32.totalorder %s15, 3
      %p151 = por %p149, %p150
      %p152 = scmp.ne.s32.totalorder %s144, %s147
      %p153 = scmp.eq.s32.totalorder %s15, 0
      %p154 = por %p152, %p153
      %p155 = scmp.ne.s32.totalorder %s144, %s147
      %p156 = scmp.eq.s32.totalorder %s20, 3
      %p157 = por %p155, %p156
      %p158 = scmp.ne.s32.totalorder %s147, %s148
      %p159 = scmp.eq.s32.totalorder %s20, 0
      %p160 = por %p158, %p159
      %p161 = scmp.ne.s32.totalorder %s147, %s148
      %p162 = scmp.eq.s32.totalorder %s21, 3
      %p163 = por %p161, %p162
      %p165 = scmp.ne.s32.totalorder %s148, %s164
      %p166 = scmp.eq.s32.totalorder %s21, 0
      %p167 = por %p165, %p166
      %p168 = scmp.le.s32.totalorder 1, %s15
      %p169 = scmp.lt.s32.totalorder %s15, 5
      %p170 = pnand %p168, %p169
      %p171 = pneg %p170
      // Predicated region
      $region9: #{tpu_custom_call.1} parent=5 // pred_check
        _
      $region10: #{tpu_custom_call.1} parent=5 // pred_check_branch
        %173 = sbr.rel (%p170) target = $region12
      $region11: #{tpu_custom_call.1} parent=5 // pred_region
        %s174 = ssub.s32 %s15, 1
        // Predicated region
        $region13: #{tpu_custom_call.1} parent=11 // pred_check
          %p175 = pneg %p76
        $region14: #{tpu_custom_call.1} parent=11 // pred_check_branch
          %177 = sbr.rel (%p175) target = $region16
        $region15: #{tpu_custom_call.1} parent=11 // pred_region
          %s179 = ssub.s32 512, 512
          %180 = vsyncadd [#allocation5], %s179
          %s181 = sshll.u32 [#allocation4], 4
          %s182 = int_to_ptr.vmem [resolvable:$true] %s181
          %187 = dma.hbm_to_vmem [thread:$0]  %s1, 512, %s182, [#allocation5], 128, 128, 8
        $region16: #{tpu_custom_call.1} parent=11 // pred_fallthru
          _
      $region12: #{tpu_custom_call.1} parent=5 // pred_fallthru
        _
      %p188 = scmp.lt.s32.totalorder %s15, 4
      // Predicated region
      $region17: #{tpu_custom_call.1} parent=5 // pred_check
        %p189 = pneg %p188
      $region18: #{tpu_custom_call.1} parent=5 // pred_check_branch
        %191 = sbr.rel (%p189) target = $region20
      $region19: #{tpu_custom_call.1} parent=5 // pred_region
        // Predicated region
        $region21: #{tpu_custom_call.1} parent=19 // pred_check
          %p192 = pneg %p49
        $region22: #{tpu_custom_call.1} parent=19 // pred_check_branch
          %194 = sbr.rel (%p192) target = $region24
        $region23: #{tpu_custom_call.1} parent=19 // pred_region
          %s195 = sand.u32 %s39, 1
          %s196 = scalar_lea.sflag [#allocation3], %s195
          %s197 = sand.u32 %s39, 1
          %s198 = smul.addr %s197, 8
          %s199 = scalar_lea.vmem [#allocation2], %s198
          %s201 = ssub.s32 128, 128
          %202 = vsyncadd %s196, %s201
          %s203 = smul.addr %s22, 2
          %s204 = sadd.s32 %s23, %s203
          %s205 = smul.addr %s204, 128
          %s206 = scalar_lea.hbm %s0, %s205
          %s208 = sshll.u32 %s199, 4
          %s209 = int_to_ptr.vmem [resolvable:$true] %s208
          %211 = dma.hbm_to_vmem [thread:$0]  %s206, 128, %s209, %s196
        $region24: #{tpu_custom_call.1} parent=19 // pred_fallthru
          _
      $region20: #{tpu_custom_call.1} parent=5 // pred_fallthru
        _
      %p212 = scmp.le.s32.totalorder 1, %s15
      %p213 = scmp.lt.s32.totalorder %s15, 5
      %p214 = pnand %p212, %p213
      %p215 = pneg %p214
      // Predicated region
      $region25: #{tpu_custom_call.1} parent=5 // pred_check
        _
      $region26: #{tpu_custom_call.1} parent=5 // pred_check_branch
        %217 = sbr.rel (%p214) target = $region28
      $region27: #{tpu_custom_call.1} parent=5 // pred_region
        %s218 = ssub.s32 %s15, 1
        %s219 = sand.u32 %s42, 1
        %s220 = scalar_lea.sflag [#allocation3], %s219
        %s221 = sand.u32 %s42, 1
        %s222 = smul.addr %s221, 8
        %s223 = scalar_lea.vmem [#allocation2], %s222
        // Predicated region
        $region29: #{tpu_custom_call.1} parent=27 // pred_check
          %p224 = pneg %p55
        $region30: #{tpu_custom_call.1} parent=27 // pred_check_branch
          %226 = sbr.rel (%p224) target = $region32
        $region31: #{tpu_custom_call.1} parent=27 // pred_region
          %227 = dma.done %s220, 128
        $region32: #{tpu_custom_call.1} parent=27 // pred_fallthru
          _
        // Predicated region
        $region33: #{tpu_custom_call.1} parent=27 // pred_check
          %p228 = pneg %p76
        $region34: #{tpu_custom_call.1} parent=27 // pred_check_branch
          %230 = sbr.rel (%p228) target = $region36
        $region35: #{tpu_custom_call.1} parent=27 // pred_region
          %231 = dma.done [#allocation5], 512
        $region36: #{tpu_custom_call.1} parent=27 // pred_fallthru
          _
        %s232 = sand.u32 %s42, 1
        %s233 = scalar_lea.sflag [#allocation3], %s232
        %s234 = sand.u32 %s42, 1
        %s235 = smul.addr %s234, 8
        %s236 = scalar_lea.vmem [#allocation2], %s235
        %p237 = pneg %p55
        %p238 = pneg %p52
        %p239 = pneg %p76
        %p240 = pneg %p73
        %p241 = pneg %p104
        %p242 = pneg %p101
        %s243 = sand.u32 %s91, 1
        %s244 = sand.u32 %s91, 1
        %s245 = smul.addr %s244, 32
        %s246 = scalar_lea.vmem [#allocation6], %s245
        %p247 = pneg %p132
        %p248 = pneg %p129
        %s249 = sand.u32 %s119, 1
        %s250 = sand.u32 %s119, 1
        %s251 = smul.addr %s250, 32
        %s252 = scalar_lea.vmem [#allocation7], %s251
        %p253 = pneg %p160
        %p254 = pneg %p157
        %s255 = sand.u32 %s147, 1
        %s256 = sand.u32 %s147, 1
        %s257 = smul.addr %s256, 32
        %s258 = scalar_lea.vmem [#allocation8], %s257
        %v259 = vld [vmem:[%s223] sm:$0xff]
        %v260 = vld [vmem:[#allocation4] sm:$0xff]
        %v261 = vld [vmem:[#allocation4 + $0x8] sm:$0xff]
        %v262 = vld [vmem:[#allocation4 + $0x10] sm:$0xff]
        %v263 = vld [vmem:[#allocation4 + $0x18] sm:$0xff]
        %vm264 = vcmask 261120
        %v266 = vsel %vm264, %v259, 0
        %268 = vmatprep.subr.mxu0 0.0
        %269 = vmatpush1.msra.mxu0 %v260
        %270 = vmatprep.subr.mxu0 0.0
        %271 = vmatpush1.msra.mxu0 %v261
        %272 = vmatprep.subr.mxu0 0.0
        %273 = vmatpush1.msra.mxu0 %v262
        %274 = vmatprep.subr.mxu0 0.0
        %275 = vmatpush1.msra.mxu0 %v263
        %276 = vmatprep.subr.mxu0 0.0
        %277 = vmatpush1.msra.mxu0 0.0
        %278 = vmatprep.subr.mxu0 0.0
        %279 = vmatpush1.msra.mxu0 0.0
        %280 = vmatprep.subr.mxu0 0.0
        %281 = vmatpush1.msra.mxu0 0.0
        %282 = vmatprep.subr.mxu0 0.0
        %283 = vmatpush1.msra.mxu0 0.0
        %284 = vmatprep.subr.mxu0 0.0
        %285 = vmatpush1.msra.mxu0 0.0
        %286 = vmatprep.subr.mxu0 0.0
        %287 = vmatpush1.msra.mxu0 0.0
        %288 = vmatprep.subr.mxu0 0.0
        %289 = vmatpush1.msra.mxu0 0.0
        %290 = vmatprep.subr.mxu0 0.0
        %291 = vmatpush1.msra.mxu0 0.0
        %292 = vmatprep.subr.mxu0 0.0
        %293 = vmatpush1.msra.mxu0 0.0
        %294 = vmatprep.subr.mxu0 0.0
        %295 = vmatpush1.msra.mxu0 0.0
        %296 = vmatprep.subr.mxu0 0.0
        %297 = vmatpush1.msra.mxu0 0.0
        %298 = vmatprep.subr.mxu0 0.0
        %299 = vmatpush1.msra.mxu0 0.0
        %300 = vmatprep.subr.mxu0 0.0
        %301 = vmatpush1.msra.mxu0 0.0
        %302 = vmatprep.subr.mxu0 0.0
        %303 = vmatpush1.msra.mxu0 0.0
        %304 = vmatprep.subr.mxu0 0.0
        %305 = vmatpush1.msra.mxu0 0.0
        %306 = vmatprep.subr.mxu0 0.0
        %307 = vmatpush1.msra.mxu0 0.0
        %308 = vmatprep.subr.mxu0 0.0
        %309 = vmatpush1.msra.mxu0 0.0
        %310 = vmatprep.subr.mxu0 0.0
        %311 = vmatpush1.msra.mxu0 0.0
        %312 = vmatprep.subr.mxu0 0.0
        %313 = vmatpush1.msra.mxu0 0.0
        %314 = vmatprep.subr.mxu0 0.0
        %315 = vmatpush1.msra.mxu0 0.0
        %316 = vmatprep.subr.mxu0 0.0
        %317 = vmatpush1.msra.mxu0 0.0
        %318 = vmatprep.subr.mxu0 0.0
        %319 = vmatpush1.msra.mxu0 0.0
        %320 = vmatprep.subr.mxu0 0.0
        %321 = vmatpush1.msra.mxu0 0.0
        %322 = vmatprep.subr.mxu0 0.0
        %323 = vmatpush1.msra.mxu0 0.0
        %324 = vmatprep.subr.mxu0 0.0
        %325 = vmatpush1.msra.mxu0 0.0
        %326 = vmatprep.subr.mxu0 0.0
        %327 = vmatpush1.msra.mxu0 0.0
        %328 = vmatprep.subr.mxu0 0.0
        %329 = vmatpush1.msra.mxu0 0.0
        %330 = vmatprep.subr.mxu0 0.0
        %331 = vmatpush1.msra.mxu0 0.0
        %332 = vmatprep.mubr.f32.mxu0 0.0
        %333 = vmatmul.mubr.f32.gmra.mrb[0].mxu0 %v266
        %v334 = vpop.f32.mrb[0].mxu0
        %v335 = vadd.f32 0.0, %v334
        %v336 = vpop.f32.mrb[0].mxu0
        %337 = vdwg.mxu0
        %vm338 = vcmask 64512
        %339 = vst.msk [vmem:[%s246] sm:$0xff] %vm338, %v335
        %341 = vrot.lane.b32.xlu0 %v335, 96
        %v342 = vpop.permute.xlu0 %341
        %344 = vst.msk [vmem:[%s252] sm:$0xff] %vm338, %v342
        %345 = vrot.lane.b32.xlu0 %v335, 64
        %v346 = vpop.permute.xlu0 %345
        %348 = vst.msk [vmem:[%s258] sm:$0xff] %vm338, %v346
        %349 = vrot.lane.b32.xlu0 %v335, 120
        %v350 = vpop.permute.xlu0 %349
        %s352 = scalar_lea.vmem %s246, 8 [#allocation6]
        %353 = vst.msk [vmem:[%s352] sm:$0xff] %vm338, %v350
        %354 = vrot.lane.b32.xlu0 %v335, 88
        %v355 = vpop.permute.xlu0 %354
        %s357 = scalar_lea.vmem %s252, 8 [#allocation7]
        %358 = vst.msk [vmem:[%s357] sm:$0xff] %vm338, %v355
        %359 = vrot.lane.b32.xlu0 %v335, 56
        %v360 = vpop.permute.xlu0 %359
        %s362 = scalar_lea.vmem %s258, 8 [#allocation8]
        %363 = vst.msk [vmem:[%s362] sm:$0xff] %vm338, %v360
        %364 = vrot.lane.b32.xlu0 %v335, 112
        %v365 = vpop.permute.xlu0 %364
        %s367 = scalar_lea.vmem %s246, 16 [#allocation6]
        %368 = vst.msk [vmem:[%s367] sm:$0xff] %vm338, %v365
        %369 = vrot.lane.b32.xlu0 %v335, 80
        %v370 = vpop.permute.xlu0 %369
        %s372 = scalar_lea.vmem %s252, 16 [#allocation7]
        %373 = vst.msk [vmem:[%s372] sm:$0xff] %vm338, %v370
        %374 = vrot.lane.b32.xlu0 %v335, 48
        %v375 = vpop.permute.xlu0 %374
        %s377 = scalar_lea.vmem %s258, 16 [#allocation8]
        %378 = vst.msk [vmem:[%s377] sm:$0xff] %vm338, %v375
        %379 = vrot.lane.b32.xlu0 %v335, 104
        %v380 = vpop.permute.xlu0 %379
        %s382 = scalar_lea.vmem %s246, 24 [#allocation6]
        %383 = vst.msk [vmem:[%s382] sm:$0xff] %vm338, %v380
        %384 = vrot.lane.b32.xlu0 %v335, 72
        %v385 = vpop.permute.xlu0 %384
        %s387 = scalar_lea.vmem %s252, 24 [#allocation7]
        %388 = vst.msk [vmem:[%s387] sm:$0xff] %vm338, %v385
        %389 = vrot.lane.b32.xlu0 %v335, 40
        %v390 = vpop.permute.xlu0 %389
        %s392 = scalar_lea.vmem %s258, 24 [#allocation8]
        %393 = vst.msk [vmem:[%s392] sm:$0xff] %vm338, %v390
        %s394 = sand.u32 %s91, 1
        %s395 = sand.u32 %s91, 1
        %s396 = smul.addr %s395, 32
        %s397 = scalar_lea.vmem [#allocation6], %s396
        %s398 = sand.u32 %s119, 1
        %s399 = sand.u32 %s119, 1
        %s400 = smul.addr %s399, 32
        %s401 = scalar_lea.vmem [#allocation7], %s400
        %s402 = sand.u32 %s147, 1
        %s403 = sand.u32 %s147, 1
        %s404 = smul.addr %s403, 32
        %s405 = scalar_lea.vmem [#allocation8], %s404
        // Predicated region
        $region37: #{tpu_custom_call.1} parent=27 // pred_check
          %p406 = pneg %p101
        $region38: #{tpu_custom_call.1} parent=27 // pred_check_branch
          %408 = sbr.rel (%p406) target = $region40
        $region39: #{tpu_custom_call.1} parent=27 // pred_region
          %s409 = smul.addr %s24, 8
          %s410 = sadd.s32 %s25, %s409
          %s411 = smul.addr %s410, 8
          %s412 = scalar_lea.vmem %s2, %s411
          // Predicated region
          $region41: #{tpu_custom_call.1} parent=39 // pred_check
            _
          $region42: #{tpu_custom_call.1} parent=39 // pred_check_branch
            %414 = sbr.rel (0) target = $region44
          $region43: #{tpu_custom_call.1} parent=39 // pred_region
            // Predicated region
            $region45: #{tpu_custom_call.1} parent=43 // pred_check
              _
            $region46: #{tpu_custom_call.1} parent=43 // pred_check_branch
              %416 = sbr.rel (0) target = $region48
            $region47: #{tpu_custom_call.1} parent=43 // pred_region
              // Predicated region
              $region60: #{tpu_custom_call.1} parent=47 // pred_check
                _
              $region61: #{tpu_custom_call.1} parent=47 // pred_check_branch
                %437 = sbr.rel (0) target = $region63
              $region62: #{tpu_custom_call.1} parent=47 // pred_region
                loop: start=0, step=1, limit=1
                $region64: #{tpu_custom_call.1} parent=62 // loop_pre_header
                  _
                $region65: #{tpu_custom_call.1} parent=62 // loop_header
                  %s439 = sphi 0, %s443
                  %p440 = scmp.ge.s32.totalorder %s439, 1
                  %s444 = sphi %s397, %s397
                  %s445 = sphi %s412, %s412
                $region66: #{tpu_custom_call.1} parent=62 // loop_header_branch
                  %442 = sbr.rel (%p440) target = $region70
                $region67: #{tpu_custom_call.1} parent=62 // loop_body
                  %v446 = vld [vmem:[%s444] sm:$0xff]
                  %447 = vst [vmem:[%s445] sm:$0xff] %v446
                  %v448 = vld [vmem:[%s444 + $0x8] sm:$0xff]
                  %449 = vst [vmem:[%s445 + $0x10] sm:$0xff] %v448
                  %v450 = vld [vmem:[%s444 + $0x10] sm:$0xff]
                  %451 = vst [vmem:[%s445 + $0x20] sm:$0xff] %v450
                  %v452 = vld [vmem:[%s444 + $0x18] sm:$0xff]
                  %453 = vst [vmem:[%s445 + $0x30] sm:$0xff] %v452
                $region68: #{tpu_custom_call.1} parent=62 // loop_footer
                  %s443 = sadd.s32 1, %s439
                $region69: #{tpu_custom_call.1} parent=62 // loop_footer_branch
                  %438 = sbr.rel target = $region65
                $region70: #{tpu_custom_call.1} parent=62 // loop_exit
                  _
              $region63: #{tpu_custom_call.1} parent=47 // pred_fallthru
                _
              // Predicated region
              $region71: #{tpu_custom_call.1} parent=47 // pred_check
                _
              $region72: #{tpu_custom_call.1} parent=47 // pred_check_branch
                %455 = sbr.rel target = $region74
              $region73: #{tpu_custom_call.1} parent=47 // pred_region
                _
              $region74: #{tpu_custom_call.1} parent=47 // pred_fallthru
                _
            $region48: #{tpu_custom_call.1} parent=43 // pred_fallthru
              _
            // Predicated region
            $region49: #{tpu_custom_call.1} parent=43 // pred_check
              _
            $region50: #{tpu_custom_call.1} parent=43 // pred_check_branch
              %418 = sbr.rel target = $region52
            $region51: #{tpu_custom_call.1} parent=43 // pred_region
              loop: start=0, step=1, limit=1
              $region53: #{tpu_custom_call.1} parent=51 // loop_pre_header
                _
              $region54: #{tpu_custom_call.1} parent=51 // loop_header
                %s421 = sphi 0, %s425
                %p422 = scmp.ge.s32.totalorder %s421, 1
                %s426 = sphi %s397, %s397
                %s427 = sphi %s412, %s412
              $region55: #{tpu_custom_call.1} parent=51 // loop_header_branch
                %424 = sbr.rel (%p422) target = $region59
              $region56: #{tpu_custom_call.1} parent=51 // loop_body
                %v428 = vld [vmem:[%s426] sm:$0xff]
                %429 = vst [vmem:[%s427] sm:$0xff] %v428
                %v430 = vld [vmem:[%s426 + $0x8] sm:$0xff]
                %431 = vst [vmem:[%s427 + $0x10] sm:$0xff] %v430
                %v432 = vld [vmem:[%s426 + $0x10] sm:$0xff]
                %433 = vst [vmem:[%s427 + $0x20] sm:$0xff] %v432
                %v434 = vld [vmem:[%s426 + $0x18] sm:$0xff]
                %435 = vst [vmem:[%s427 + $0x30] sm:$0xff] %v434
              $region57: #{tpu_custom_call.1} parent=51 // loop_footer
                %s425 = sadd.s32 1, %s421
              $region58: #{tpu_custom_call.1} parent=51 // loop_footer_branch
                %420 = sbr.rel target = $region54
              $region59: #{tpu_custom_call.1} parent=51 // loop_exit
                _
            $region52: #{tpu_custom_call.1} parent=43 // pred_fallthru
              _
          $region44: #{tpu_custom_call.1} parent=39 // pred_fallthru
            _
          %456 = vnop
        $region40: #{tpu_custom_call.1} parent=27 // pred_fallthru
          _
        // Predicated region
        $region75: #{tpu_custom_call.1} parent=27 // pred_check
          %p457 = pneg %p129
        $region76: #{tpu_custom_call.1} parent=27 // pred_check_branch
          %459 = sbr.rel (%p457) target = $region78
        $region77: #{tpu_custom_call.1} parent=27 // pred_region
          %s460 = smul.addr %s24, 8
          %s461 = sadd.s32 %s25, %s460
          %s462 = smul.addr %s461, 8
          %s463 = scalar_lea.vmem %s3, %s462
          // Predicated region
          $region79: #{tpu_custom_call.1} parent=77 // pred_check
            _
          $region80: #{tpu_custom_call.1} parent=77 // pred_check_branch
            %465 = sbr.rel (0) target = $region82
          $region81: #{tpu_custom_call.1} parent=77 // pred_region
            // Predicated region
            $region83: #{tpu_custom_call.1} parent=81 // pred_check
              _
            $region84: #{tpu_custom_call.1} parent=81 // pred_check_branch
              %467 = sbr.rel (0) target = $region86
            $region85: #{tpu_custom_call.1} parent=81 // pred_region
              // Predicated region
              $region98: #{tpu_custom_call.1} parent=85 // pred_check
                _
              $region99: #{tpu_custom_call.1} parent=85 // pred_check_branch
                %488 = sbr.rel (0) target = $region101
              $region100: #{tpu_custom_call.1} parent=85 // pred_region
                loop: start=0, step=1, limit=1
                $region102: #{tpu_custom_call.1} parent=100 // loop_pre_header
                  _
                $region103: #{tpu_custom_call.1} parent=100 // loop_header
                  %s490 = sphi 0, %s494
                  %p491 = scmp.ge.s32.totalorder %s490, 1
                  %s495 = sphi %s401, %s401
                  %s496 = sphi %s463, %s463
                $region104: #{tpu_custom_call.1} parent=100 // loop_header_branch
                  %493 = sbr.rel (%p491) target = $region108
                $region105: #{tpu_custom_call.1} parent=100 // loop_body
                  %v497 = vld [vmem:[%s495] sm:$0xff]
                  %498 = vst [vmem:[%s496] sm:$0xff] %v497
                  %v499 = vld [vmem:[%s495 + $0x8] sm:$0xff]
                  %500 = vst [vmem:[%s496 + $0x10] sm:$0xff] %v499
                  %v501 = vld [vmem:[%s495 + $0x10] sm:$0xff]
                  %502 = vst [vmem:[%s496 + $0x20] sm:$0xff] %v501
                  %v503 = vld [vmem:[%s495 + $0x18] sm:$0xff]
                  %504 = vst [vmem:[%s496 + $0x30] sm:$0xff] %v503
                $region106: #{tpu_custom_call.1} parent=100 // loop_footer
                  %s494 = sadd.s32 1, %s490
                $region107: #{tpu_custom_call.1} parent=100 // loop_footer_branch
                  %489 = sbr.rel target = $region103
                $region108: #{tpu_custom_call.1} parent=100 // loop_exit
                  _
              $region101: #{tpu_custom_call.1} parent=85 // pred_fallthru
                _
              // Predicated region
              $region109: #{tpu_custom_call.1} parent=85 // pred_check
                _
              $region110: #{tpu_custom_call.1} parent=85 // pred_check_branch
                %506 = sbr.rel target = $region112
              $region111: #{tpu_custom_call.1} parent=85 // pred_region
                _
              $region112: #{tpu_custom_call.1} parent=85 // pred_fallthru
                _
            $region86: #{tpu_custom_call.1} parent=81 // pred_fallthru
              _
            // Predicated region
            $region87: #{tpu_custom_call.1} parent=81 // pred_check
              _
            $region88: #{tpu_custom_call.1} parent=81 // pred_check_branch
              %469 = sbr.rel target = $region90
            $region89: #{tpu_custom_call.1} parent=81 // pred_region
              loop: start=0, step=1, limit=1
              $region91: #{tpu_custom_call.1} parent=89 // loop_pre_header
                _
              $region92: #{tpu_custom_call.1} parent=89 // loop_header
                %s472 = sphi 0, %s476
                %p473 = scmp.ge.s32.totalorder %s472, 1
                %s477 = sphi %s401, %s401
                %s478 = sphi %s463, %s463
              $region93: #{tpu_custom_call.1} parent=89 // loop_header_branch
                %475 = sbr.rel (%p473) target = $region97
              $region94: #{tpu_custom_call.1} parent=89 // loop_body
                %v479 = vld [vmem:[%s477] sm:$0xff]
                %480 = vst [vmem:[%s478] sm:$0xff] %v479
                %v481 = vld [vmem:[%s477 + $0x8] sm:$0xff]
                %482 = vst [vmem:[%s478 + $0x10] sm:$0xff] %v481
                %v483 = vld [vmem:[%s477 + $0x10] sm:$0xff]
                %484 = vst [vmem:[%s478 + $0x20] sm:$0xff] %v483
                %v485 = vld [vmem:[%s477 + $0x18] sm:$0xff]
                %486 = vst [vmem:[%s478 + $0x30] sm:$0xff] %v485
              $region95: #{tpu_custom_call.1} parent=89 // loop_footer
                %s476 = sadd.s32 1, %s472
              $region96: #{tpu_custom_call.1} parent=89 // loop_footer_branch
                %471 = sbr.rel target = $region92
              $region97: #{tpu_custom_call.1} parent=89 // loop_exit
                _
            $region90: #{tpu_custom_call.1} parent=81 // pred_fallthru
              _
          $region82: #{tpu_custom_call.1} parent=77 // pred_fallthru
            _
          %507 = vnop
        $region78: #{tpu_custom_call.1} parent=27 // pred_fallthru
          _
        // Predicated region
        $region113: #{tpu_custom_call.1} parent=27 // pred_check
          %p508 = pneg %p157
        $region114: #{tpu_custom_call.1} parent=27 // pred_check_branch
          %510 = sbr.rel (%p508) target = $region116
        $region115: #{tpu_custom_call.1} parent=27 // pred_region
          %s511 = smul.addr %s24, 8
          %s512 = sadd.s32 %s25, %s511
          %s513 = smul.addr %s512, 8
          %s514 = scalar_lea.vmem %s4, %s513
          // Predicated region
          $region117: #{tpu_custom_call.1} parent=115 // pred_check
            _
          $region118: #{tpu_custom_call.1} parent=115 // pred_check_branch
            %516 = sbr.rel (0) target = $region120
          $region119: #{tpu_custom_call.1} parent=115 // pred_region
            // Predicated region
            $region121: #{tpu_custom_call.1} parent=119 // pred_check
              _
            $region122: #{tpu_custom_call.1} parent=119 // pred_check_branch
              %518 = sbr.rel (0) target = $region124
            $region123: #{tpu_custom_call.1} parent=119 // pred_region
              // Predicated region
              $region136: #{tpu_custom_call.1} parent=123 // pred_check
                _
              $region137: #{tpu_custom_call.1} parent=123 // pred_check_branch
                %539 = sbr.rel (0) target = $region139
              $region138: #{tpu_custom_call.1} parent=123 // pred_region
                loop: start=0, step=1, limit=1
                $region140: #{tpu_custom_call.1} parent=138 // loop_pre_header
                  _
                $region141: #{tpu_custom_call.1} parent=138 // loop_header
                  %s541 = sphi 0, %s545
                  %p542 = scmp.ge.s32.totalorder %s541, 1
                  %s546 = sphi %s405, %s405
                  %s547 = sphi %s514, %s514
                $region142: #{tpu_custom_call.1} parent=138 // loop_header_branch
                  %544 = sbr.rel (%p542) target = $region146
                $region143: #{tpu_custom_call.1} parent=138 // loop_body
                  %v548 = vld [vmem:[%s546] sm:$0xff]
                  %549 = vst [vmem:[%s547] sm:$0xff] %v548
                  %v550 = vld [vmem:[%s546 + $0x8] sm:$0xff]
                  %551 = vst [vmem:[%s547 + $0x10] sm:$0xff] %v550
                  %v552 = vld [vmem:[%s546 + $0x10] sm:$0xff]
                  %553 = vst [vmem:[%s547 + $0x20] sm:$0xff] %v552
                  %v554 = vld [vmem:[%s546 + $0x18] sm:$0xff]
                  %555 = vst [vmem:[%s547 + $0x30] sm:$0xff] %v554
                $region144: #{tpu_custom_call.1} parent=138 // loop_footer
                  %s545 = sadd.s32 1, %s541
                $region145: #{tpu_custom_call.1} parent=138 // loop_footer_branch
                  %540 = sbr.rel target = $region141
                $region146: #{tpu_custom_call.1} parent=138 // loop_exit
                  _
              $region139: #{tpu_custom_call.1} parent=123 // pred_fallthru
                _
              // Predicated region
              $region147: #{tpu_custom_call.1} parent=123 // pred_check
                _
              $region148: #{tpu_custom_call.1} parent=123 // pred_check_branch
                %557 = sbr.rel target = $region150
              $region149: #{tpu_custom_call.1} parent=123 // pred_region
                _
              $region150: #{tpu_custom_call.1} parent=123 // pred_fallthru
                _
            $region124: #{tpu_custom_call.1} parent=119 // pred_fallthru
              _
            // Predicated region
            $region125: #{tpu_custom_call.1} parent=119 // pred_check
              _
            $region126: #{tpu_custom_call.1} parent=119 // pred_check_branch
              %520 = sbr.rel target = $region128
            $region127: #{tpu_custom_call.1} parent=119 // pred_region
              loop: start=0, step=1, limit=1
              $region129: #{tpu_custom_call.1} parent=127 // loop_pre_header
                _
              $region130: #{tpu_custom_call.1} parent=127 // loop_header
                %s523 = sphi 0, %s527
                %p524 = scmp.ge.s32.totalorder %s523, 1
                %s528 = sphi %s405, %s405
                %s529 = sphi %s514, %s514
              $region131: #{tpu_custom_call.1} parent=127 // loop_header_branch
                %526 = sbr.rel (%p524) target = $region135
              $region132: #{tpu_custom_call.1} parent=127 // loop_body
                %v530 = vld [vmem:[%s528] sm:$0xff]
                %531 = vst [vmem:[%s529] sm:$0xff] %v530
                %v532 = vld [vmem:[%s528 + $0x8] sm:$0xff]
                %533 = vst [vmem:[%s529 + $0x10] sm:$0xff] %v532
                %v534 = vld [vmem:[%s528 + $0x10] sm:$0xff]
                %535 = vst [vmem:[%s529 + $0x20] sm:$0xff] %v534
                %v536 = vld [vmem:[%s528 + $0x18] sm:$0xff]
                %537 = vst [vmem:[%s529 + $0x30] sm:$0xff] %v536
              $region133: #{tpu_custom_call.1} parent=127 // loop_footer
                %s527 = sadd.s32 1, %s523
              $region134: #{tpu_custom_call.1} parent=127 // loop_footer_branch
                %522 = sbr.rel target = $region130
              $region135: #{tpu_custom_call.1} parent=127 // loop_exit
                _
            $region128: #{tpu_custom_call.1} parent=119 // pred_fallthru
              _
          $region120: #{tpu_custom_call.1} parent=115 // pred_fallthru
            _
          %558 = vnop
        $region116: #{tpu_custom_call.1} parent=27 // pred_fallthru
          _
      $region28: #{tpu_custom_call.1} parent=5 // pred_fallthru
        _
      %p559 = scmp.le.s32.totalorder 2, %s15
      // Predicated region
      $region151: #{tpu_custom_call.1} parent=5 // pred_check
        %p560 = pneg %p559
      $region152: #{tpu_custom_call.1} parent=5 // pred_check_branch
        %562 = sbr.rel (%p560) target = $region154
      $region153: #{tpu_custom_call.1} parent=5 // pred_region
        %s563 = ssub.s32 %s15, 2
        // Predicated region
        $region155: #{tpu_custom_call.1} parent=153 // pred_check
          %p564 = pneg %p107
        $region156: #{tpu_custom_call.1} parent=153 // pred_check_branch
          %566 = sbr.rel (%p564) target = $region158
        $region157: #{tpu_custom_call.1} parent=153 // pred_region
          %s567 = sand.u32 %s92, 1
          %s568 = sand.u32 %s92, 1
          %s569 = smul.addr %s568, 32
          %s570 = scalar_lea.vmem [#allocation6], %s569
        $region158: #{tpu_custom_call.1} parent=153 // pred_fallthru
          _
        // Predicated region
        $region159: #{tpu_custom_call.1} parent=153 // pred_check
          %p571 = pneg %p135
        $region160: #{tpu_custom_call.1} parent=153 // pred_check_branch
          %573 = sbr.rel (%p571) target = $region162
        $region161: #{tpu_custom_call.1} parent=153 // pred_region
          %s574 = sand.u32 %s120, 1
          %s575 = sand.u32 %s120, 1
          %s576 = smul.addr %s575, 32
          %s577 = scalar_lea.vmem [#allocation7], %s576
        $region162: #{tpu_custom_call.1} parent=153 // pred_fallthru
          _
        // Predicated region
        $region163: #{tpu_custom_call.1} parent=153 // pred_check
          %p578 = pneg %p163
        $region164: #{tpu_custom_call.1} parent=153 // pred_check_branch
          %580 = sbr.rel (%p578) target = $region166
        $region165: #{tpu_custom_call.1} parent=153 // pred_region
          %s581 = sand.u32 %s148, 1
          %s582 = sand.u32 %s148, 1
          %s583 = smul.addr %s582, 32
          %s584 = scalar_lea.vmem [#allocation8], %s583
        $region166: #{tpu_custom_call.1} parent=153 // pred_fallthru
          _
      $region154: #{tpu_custom_call.1} parent=5 // pred_fallthru
        _
    $region6: #{tpu_custom_call.1} parent=1 // loop_footer
      %s19 = sadd.s32 1, %s15
    $region7: #{tpu_custom_call.1} parent=1 // loop_footer_branch
      %14 = sbr.rel target = $region3
    $region8: #{tpu_custom_call.1} parent=1 // loop_exit
      _
    %585 = vsyncpa [#allocation3], 1
    %s586 = scalar_lea.sflag [#allocation3], 1
    %587 = vsyncpa %s586, 1
    %588 = vsyncpa [#allocation5], 1

</llo_original>
